<compile_context>
chip_gen: v5e
topology: v5e:2x2
jax: 0.10.0
libtpu: 0.0.40
codegen_flags: <defaults>
</compile_context>

<pallas_src>
import functools

import jax
import jax.numpy as jnp
from jax.experimental import pallas as pl
from jax.experimental.pallas import tpu as pltpu


def _mfim_kernel(x_ref, wcat_ref, bcat_ref, wpw_ref, bout_ref, o_ref, *, inc):
    # x_ref: (bn, inc, tm) -- pixels on the lane axis (lane-dense loads/stores).
    bn = x_ref.shape[0]
    x = x_ref[...]                                               # f32

    # Fused m1/m2/p1: one MXU pass over x instead of three tiny matmuls.
    wcat = jnp.broadcast_to(wcat_ref[...][None], (bn,) + wcat_ref.shape)
    cat = jnp.einsum("boc,bct->bot", wcat, x,
                     preferred_element_type=jnp.float32)
    cat = cat + bcat_ref[...][None]                              # (bn, rcat, tm)

    # Consume x1/x2 immediately so they die (low vreg pressure).
    gated = cat[:, :inc, :] * cat[:, inc:2 * inc, :]             # x1 * x2
    p1 = cat[:, 2 * inc:, :]                                     # p1 (bias folded into bout)

    wpw = jnp.broadcast_to(wpw_ref[...][None], (bn,) + wpw_ref.shape)
    pw = jnp.einsum("boc,bct->bot", wpw, gated,
                    preferred_element_type=jnp.float32)
    o_ref[...] = (pw + p1 + bout_ref[...][None]).astype(o_ref.dtype)


def _choose_tiles(n, hw, tm_lane):
    """Returns (bn images per step, tm lanes per step, grid_j pixel-tile count)."""
    if hw > tm_lane:
        # Large-image regime: one image per step, big lane tile.
        tm = tm_lane
        if hw % tm != 0:
            # Prefer an exactly-dividing multiple of 128 (unmasked stores),
            # as long as the tile stays reasonably large.
            t = (tm_lane // 128) * 128
            while t >= 2048:
                if hw % t == 0:
                    tm = t
                    break
                t -= 128
        return 1, tm, pl.cdiv(hw, tm)

    # Small-image regime: whole image per step; batch images per step to
    # amortize per-step pipeline overhead.
    tm = hw
    max_bn = max(1, tm_lane // max(hw, 1))
    bn = 1
    for cand in range(min(n, max_bn), 0, -1):
        if n % cand == 0:
            bn = cand
            break
    # Keep >= 2 grid steps when n allows so both v7x TensorCores get work.
    if n > 1 and n // bn < 2:
        for cand in range(bn - 1, 0, -1):
            if n % cand == 0 and n // cand >= 2:
                bn = cand
                break
    return bn, tm, 1


@functools.partial(jax.jit, static_argnames=("tm_lane",))
def mfim_forward(x_nchw, params, tm_lane=16384):
    """MFIM forward.

    x_nchw: (N, inc, H, W) float32.
    params use PyTorch Conv2d layout: weights (out_ch, in_ch), biases (out_ch,).
    tm_lane: target lanes per grid step (multiple of 512).
    """
    assert tm_lane % 512 == 0
    n, inc, h, w = x_nchw.shape
    outc = params["wpw"].shape[0]
    hw = h * w
    rcat = 2 * inc + outc

    # ---- one-time (tiny) weight fusion in the wrapper -----------------------
    wcat = jnp.concatenate([params["w1"], params["w2"], params["wp1"]],
                           axis=0).astype(jnp.float32)            # (rcat, inc)
    bcat = jnp.concatenate(
        [params["b1"], params["b2"], jnp.zeros((outc,), params["b1"].dtype)]
    ).reshape(rcat, 1).astype(jnp.float32)
    wpw = params["wpw"].astype(jnp.float32)                       # (outc, inc)
    bout = (params["bpw"] + params["bp1"]).reshape(outc, 1).astype(jnp.float32)

    # ---- native layout: (N, C, H*W); no transpose, no padding copy ----------
    x3 = x_nchw.reshape(n, inc, hw)

    bn, tm, grid_j = _choose_tiles(n, hw, tm_lane)
    grid = (n // bn, grid_j)

    def full_spec(shape):
        # Grid-invariant (weights/biases); constant index map => resident in VMEM.
        return pl.BlockSpec(shape, lambda i, j: (0, 0))

    # ---- VMEM budget from real buffer math (cap safe for v7x's 64 MiB) ------
    bpe = 4
    in_tile = bn * inc * tm * bpe
    out_tile = bn * outc * tm * bpe
    io_bytes = 2 * (in_tile + out_tile)                 # double-buffered x/out
    tmp_bytes = bn * (rcat + inc + outc) * tm * bpe     # cat, gated, pw temporaries
    wt_bytes = 2 * (rcat * (inc + 1) + outc * (inc + 1)) * bpe
    needed = io_bytes + tmp_bytes + wt_bytes
    vmem_limit = int(min(max(needed + needed // 2 + (4 << 20), 32 << 20),
                         48 << 20))

    # ---- cost hint for the XLA scheduler -------------------------------------
    m_total = n * hw
    cost = pl.CostEstimate(
        flops=2 * m_total * inc * (rcat + outc) + 3 * m_total * max(inc, outc),
        transcendentals=0,
        bytes_accessed=m_total * (inc + outc) * x_nchw.dtype.itemsize
        + (rcat * (inc + 1) + outc * (inc + 1)) * bpe,
    )

    out3 = pl.pallas_call(
        functools.partial(_mfim_kernel, inc=inc),
        out_shape=jax.ShapeDtypeStruct((n, outc, hw), x_nchw.dtype),
        grid_spec=pltpu.PrefetchScalarGridSpec(
            num_scalar_prefetch=0,
            grid=grid,
            in_specs=[
                pl.BlockSpec((bn, inc, tm), lambda i, j: (i, 0, j)),  # x tile
                full_spec((rcat, inc)),    # fused [W1; W2; Wp1]
                full_spec((rcat, 1)),      # fused [b1; b2; 0]
                full_spec((outc, inc)),    # Wpw
                full_spec((outc, 1)),      # bpw + bp1 (pre-summed)
            ],
            out_specs=pl.BlockSpec((bn, outc, tm), lambda i, j: (i, 0, j)),
        ),
        compiler_params=pltpu.CompilerParams(
            dimension_semantics=("parallel", "parallel"),
            vmem_limit_bytes=vmem_limit,
        ),
        cost_estimate=cost,
    )(x3, wcat, bcat, wpw, bout)

    return out3.reshape(n, outc, h, w)


def init_params(key, inc, outc):
    """Deterministic synthetic params in PyTorch Conv2d layout:
    weight (out_ch, in_ch) [1x1 kernel squeezed], bias (out_ch,)."""
    ks = jax.random.split(key, 8)
    s = 0.1
    return {
        "w1": s * jax.random.normal(ks[0], (inc, inc), jnp.float32),
        "b1": s * jax.random.normal(ks[1], (inc,), jnp.float32),
        "w2": s * jax.random.normal(ks[2], (inc, inc), jnp.float32),
        "b2": s * jax.random.normal(ks[3], (inc,), jnp.float32),
        "wpw": s * jax.random.normal(ks[4], (outc, inc), jnp.float32),
        "bpw": s * jax.random.normal(ks[5], (outc,), jnp.float32),
        "wp1": s * jax.random.normal(ks[6], (outc, inc), jnp.float32),
        "bp1": s * jax.random.normal(ks[7], (outc,), jnp.float32),
    }


def mfim_reference(x_nchw, params):
    """Pure-JAX reference matching the PyTorch forward (NCHW, 1x1 convs)."""
    hi = jax.lax.Precision.HIGHEST

    def conv1x1(x, wgt, b):
        y = jnp.einsum("oc,nchw->nohw", wgt, x, precision=hi)
        return y + b[None, :, None, None]

    x1 = conv1x1(x_nchw, params["w1"], params["b1"])
    x2 = conv1x1(x_nchw, params["w2"], params["b2"])
    p1 = conv1x1(x_nchw, params["wp1"], params["bp1"])
    pw = conv1x1(x1 * x2, params["wpw"], params["bpw"])
    return pw + p1


if __name__ == "__main__":
    key = jax.random.PRNGKey(0)
    k_x, k_p = jax.random.split(key)

    N, INC, OUTC, H, W = 2, 4, 8, 16, 16
    x = jax.random.normal(k_x, (N, INC, H, W), jnp.float32)
    params = init_params(k_p, INC, OUTC)

    out = mfim_forward(x, params)
    out = jax.block_until_ready(out)

    ref = mfim_reference(x, params)
    assert out.shape == (N, OUTC, H, W), out.shape
    assert jnp.allclose(out, ref, atol=1e-5, rtol=1e-5), "mismatch vs reference"

    print("KERNEL_OK")
</pallas_src>

<mosaic_0001>
module attributes {stable_mosaic.version = 11 : i64} {
  func.func @_mfim_kernel(%arg0: i32, %arg1: i32, %arg2: memref<1x4x256xf32, #tpu.memory_space<vmem>>, %arg3: memref<16x4xf32, #tpu.memory_space<vmem>>, %arg4: memref<16x1xf32, #tpu.memory_space<vmem>>, %arg5: memref<8x4xf32, #tpu.memory_space<vmem>>, %arg6: memref<8x1xf32, #tpu.memory_space<vmem>>, %arg7: memref<1x8x256xf32, #tpu.memory_space<vmem>>) attributes {dimension_semantics = [#tpu.dimension_semantics<parallel>, #tpu.dimension_semantics<parallel>], iteration_bounds = array<i64: 2, 1>, scalar_prefetch = 0 : i64, scratch_operands = 0 : i64, tpu.core_type = #tpu.core_type<tc>, window_params = [{transform_indices = @transform_0, window_bounds = array<i64: 1, 4, 256>}, {pipeline_mode = #tpu.pipeline_mode<synchronous>, transform_indices = @transform_1, window_bounds = array<i64: 16, 4>}, {pipeline_mode = #tpu.pipeline_mode<synchronous>, transform_indices = @transform_2, window_bounds = array<i64: 16, 1>}, {pipeline_mode = #tpu.pipeline_mode<synchronous>, transform_indices = @transform_3, window_bounds = array<i64: 8, 4>}, {pipeline_mode = #tpu.pipeline_mode<synchronous>, transform_indices = @transform_4, window_bounds = array<i64: 8, 1>}, {transform_indices = @transform_5, window_bounds = array<i64: 1, 8, 256>}]} {
    %c0 = arith.constant 0 : index
    %c0_0 = arith.constant 0 : index
    %c0_1 = arith.constant 0 : index
    %0 = vector.load %arg2[%c0, %c0_0, %c0_1] : memref<1x4x256xf32, #tpu.memory_space<vmem>>, vector<1x4x256xf32>
    %c0_2 = arith.constant 0 : index
    %c0_3 = arith.constant 0 : index
    %1 = vector.load %arg3[%c0_2, %c0_3] : memref<16x4xf32, #tpu.memory_space<vmem>>, vector<16x4xf32>
    %2 = vector.shape_cast %1 : vector<16x4xf32> to vector<1x16x4xf32>
    "tpu.trace_start"() <{level = 10 : i32, message = "boc,bct->bot"}> : () -> ()
    %cst = arith.constant dense<0.000000e+00> : vector<1x16x256xf32>
    %3 = tpu.matmul %2, %0, %cst {dimension_numbers = #tpu.dot_dimension_numbers<[2], [1], [1], [2], [0, 0, 0, 1, 1, 2], [0], [0]>} : vector<1x16x4xf32>, vector<1x4x256xf32>, vector<1x16x256xf32> -> vector<1x16x256xf32>
    "tpu.trace_stop"() : () -> ()
    %c0_4 = arith.constant 0 : index
    %c0_5 = arith.constant 0 : index
    %4 = vector.load %arg4[%c0_4, %c0_5] : memref<16x1xf32, #tpu.memory_space<vmem>>, vector<16x1xf32>
    %5 = vector.shape_cast %4 : vector<16x1xf32> to vector<1x16x1xf32>
    %6 = vector.broadcast %5 : vector<1x16x1xf32> to vector<1x16x256xf32>
    %7 = arith.addf %3, %6 : vector<1x16x256xf32>
    %8 = vector.extract_strided_slice %7 {offsets = [0, 0, 0], sizes = [1, 4, 256], strides = [1, 1, 1]} : vector<1x16x256xf32> to vector<1x4x256xf32>
    %9 = vector.extract_strided_slice %7 {offsets = [0, 4, 0], sizes = [1, 4, 256], strides = [1, 1, 1]} : vector<1x16x256xf32> to vector<1x4x256xf32>
    %10 = arith.mulf %8, %9 : vector<1x4x256xf32>
    %11 = vector.extract_strided_slice %7 {offsets = [0, 8, 0], sizes = [1, 8, 256], strides = [1, 1, 1]} : vector<1x16x256xf32> to vector<1x8x256xf32>
    %c0_6 = arith.constant 0 : index
    %c0_7 = arith.constant 0 : index
    %12 = vector.load %arg5[%c0_6, %c0_7] : memref<8x4xf32, #tpu.memory_space<vmem>>, vector<8x4xf32>
    %13 = vector.shape_cast %12 : vector<8x4xf32> to vector<1x8x4xf32>
    "tpu.trace_start"() <{level = 10 : i32, message = "boc,bct->bot"}> : () -> ()
    %cst_8 = arith.constant dense<0.000000e+00> : vector<1x8x256xf32>
    %14 = tpu.matmul %13, %10, %cst_8 {dimension_numbers = #tpu.dot_dimension_numbers<[2], [1], [1], [2], [0, 0, 0, 1, 1, 2], [0], [0]>} : vector<1x8x4xf32>, vector<1x4x256xf32>, vector<1x8x256xf32> -> vector<1x8x256xf32>
    "tpu.trace_stop"() : () -> ()
    %15 = arith.addf %14, %11 : vector<1x8x256xf32>
    %c0_9 = arith.constant 0 : index
    %c0_10 = arith.constant 0 : index
    %16 = vector.load %arg6[%c0_9, %c0_10] : memref<8x1xf32, #tpu.memory_space<vmem>>, vector<8x1xf32>
    %17 = vector.shape_cast %16 : vector<8x1xf32> to vector<1x8x1xf32>
    %18 = vector.broadcast %17 : vector<1x8x1xf32> to vector<1x8x256xf32>
    %19 = arith.addf %15, %18 : vector<1x8x256xf32>
    %c0_11 = arith.constant 0 : index
    %c0_12 = arith.constant 0 : index
    %c0_13 = arith.constant 0 : index
    %20 = vector.load %arg7[%c0_11, %c0_12, %c0_13] : memref<1x8x256xf32, #tpu.memory_space<vmem>>, vector<1x8x256xf32>
    tpu.vector_store %arg7[%c0_11, %c0_12, %c0_13], %19 {strides = array<i32>} : memref<1x8x256xf32, #tpu.memory_space<vmem>>, vector<1x8x256xf32>,
    return
  }
  func.func @transform_0(%arg0: i32, %arg1: i32) -> (i32, i32, i32) {
    %c0_i32 = arith.constant 0 : i32
    %c0_i32_0 = arith.constant 0 : i32
    return %arg0, %c0_i32, %arg1 : i32, i32, i32
  }
  func.func @transform_1(%arg0: i32, %arg1: i32) -> (i32, i32) {
    %c0_i32 = arith.constant 0 : i32
    %c0_i32_0 = arith.constant 0 : i32
    %c0_i32_1 = arith.constant 0 : i32
    return %c0_i32, %c0_i32_0 : i32, i32
  }
  func.func @transform_2(%arg0: i32, %arg1: i32) -> (i32, i32) {
    %c0_i32 = arith.constant 0 : i32
    %c0_i32_0 = arith.constant 0 : i32
    %c0_i32_1 = arith.constant 0 : i32
    return %c0_i32, %c0_i32_0 : i32, i32
  }
  func.func @transform_3(%arg0: i32, %arg1: i32) -> (i32, i32) {
    %c0_i32 = arith.constant 0 : i32
    %c0_i32_0 = arith.constant 0 : i32
    %c0_i32_1 = arith.constant 0 : i32
    return %c0_i32, %c0_i32_0 : i32, i32
  }
  func.func @transform_4(%arg0: i32, %arg1: i32) -> (i32, i32) {
    %c0_i32 = arith.constant 0 : i32
    %c0_i32_0 = arith.constant 0 : i32
    %c0_i32_1 = arith.constant 0 : i32
    return %c0_i32, %c0_i32_0 : i32, i32
  }
  func.func @transform_5(%arg0: i32, %arg1: i32) -> (i32, i32, i32) {
    %c0_i32 = arith.constant 0 : i32
    %c0_i32_0 = arith.constant 0 : i32
    return %arg0, %c0_i32, %arg1 : i32, i32, i32
  }
}

</mosaic_0001>

<llo_original>
// kernel: mfim_forward.1
$region0: #{mfim_forward.1}
  #allocation0 [shape = 'u32[]', space=smem, size = 0x4, offset = 0x4, fixed_abs, tag = 'smem constant byte address 0x4 - core index']
  #allocation1 [shape = 'u32[72,128]{1,0:T(1,128)}', space=vmem, size = 0x9000, scoped, tag = 'internal scratch']
  %s0 = inlined_call_operand.vmem [shape: f32[2,4,256], index: 0, kind: input, shape index: {}]
  %s1 = inlined_call_operand.vmem [shape: f32[16,4], index: 1, kind: input, shape index: {}]
  %s2 = inlined_call_operand.vmem [shape: f32[16,1], index: 2, kind: input, shape index: {}]
  %s3 = inlined_call_operand.vmem [shape: f32[8,4], index: 3, kind: input, shape index: {}]
  %s4 = inlined_call_operand.vmem [shape: f32[8,1], index: 4, kind: input, shape index: {}]
  %s5 = inlined_call_operand.vmem [shape: f32[2,8,256], index: 5, kind: output, shape index: {}]
  %s6 = sld [smem:[#allocation0]]
  $region53: #{mfim_forward.1} parent=0
    _
  %s8 = ssub.s32 1, %s6
  %s9 = scalar_select 0, %s8, %s6
  loop: start=0, step=1, limit=4
  $region2: #{mfim_forward.1} parent=0 // loop_pre_header
    _
  $region3: #{mfim_forward.1} parent=0 // loop_header
    %s11 = sphi 0, %s15
    %p12 = scmp.ge.s32.totalorder %s11, 4
    %s18 = sphi 0, %s30
    %s19 = sphi 0, %s26
    %s20 = sphi 0, %s18
    %s21 = sphi 0, %s19
    %s22 = sphi 0, %s20
    %s23 = sphi 0, %s21
    %s35 = sphi 0, %s37
    %s38 = sphi 0, %s35
    %s39 = sphi 0, %s38
    %s55 = sphi 0, %s39
    %s59 = sphi 0, %s59
    %s61 = sphi 0, %s59
    %s62 = sphi 0, %s61
    %s76 = sphi 0, %s62
    %s80 = sphi 0, %s80
    %s82 = sphi 0, %s80
    %s83 = sphi 0, %s82
    %s97 = sphi 0, %s83
    %s101 = sphi 0, %s101
    %s103 = sphi 0, %s101
    %s104 = sphi 0, %s103
    %s118 = sphi 0, %s104
    %s122 = sphi 0, %s122
    %s124 = sphi 0, %s122
    %s125 = sphi 0, %s124
    %s139 = sphi 0, %s125
    %s147 = sphi 0, %s149
    %s150 = sphi 0, %s147
    %s151 = sphi 0, %s150
    %s167 = sphi 0, %s151
  $region4: #{mfim_forward.1} parent=0 // loop_header_branch
    %14 = sbr.rel (%p12) target = $region8
  $region5: #{mfim_forward.1} parent=0 // loop_body
    %s16 = ssub.s32 %s11, 1
    %s17 = ssub.s32 %s11, 2
    %s24 = sadd.s32 1, %s19
    %p25 = scmp.ge.s32.totalorder %s24, 1
    %s26 = scalar_select %p25, 0, %s24
    %s27 = sadd.s32 1, %s18
    %s28 = scalar_select %p25, %s27, %s18
    %p29 = scmp.ge.s32.totalorder %s28, 2
    %s30 = scalar_select %p29, 0, %s28
    %s31 = ssub.s32 %s18, %s30
    %s32 = ssub.s32 %s19, %s26
    %s33 = sor.u32 %s31, %s32
    %p34 = scmp.eq.s32.totalorder %s33, 0
    %s36 = sadd.s32 %s35, 1
    %s37 = scalar_select %p34, %s35, %s36
    %p40 = pneg %p34
    %p41 = scmp.eq.s32.totalorder %s11, 1
    %p42 = por %p40, %p41
    %p43 = scmp.ne.s32.totalorder %s35, %s38
    %p44 = scmp.eq.s32.totalorder %s11, 0
    %p45 = por %p43, %p44
    %p46 = scmp.ne.s32.totalorder %s35, %s38
    %p47 = scmp.eq.s32.totalorder %s16, 1
    %p48 = por %p46, %p47
    %p49 = scmp.ne.s32.totalorder %s38, %s39
    %p50 = scmp.eq.s32.totalorder %s16, 0
    %p51 = por %p49, %p50
    %p52 = scmp.ne.s32.totalorder %s38, %s39
    %p53 = scmp.eq.s32.totalorder %s17, 1
    %p54 = por %p52, %p53
    %p56 = scmp.ne.s32.totalorder %s39, %s55
    %p57 = scmp.eq.s32.totalorder %s17, 0
    %p58 = por %p56, %p57
    %s60 = sadd.s32 %s59, 1
    %p63 = scmp.eq.s32.totalorder %s11, 1
    %p64 = scmp.ne.s32.totalorder %s59, %s61
    %p65 = scmp.eq.s32.totalorder %s11, 0
    %p66 = por %p64, %p65
    %p67 = scmp.ne.s32.totalorder %s59, %s61
    %p68 = scmp.eq.s32.totalorder %s16, 1
    %p69 = por %p67, %p68
    %p70 = scmp.ne.s32.totalorder %s61, %s62
    %p71 = scmp.eq.s32.totalorder %s16, 0
    %p72 = por %p70, %p71
    %p73 = scmp.ne.s32.totalorder %s61, %s62
    %p74 = scmp.eq.s32.totalorder %s17, 1
    %p75 = por %p73, %p74
    %p77 = scmp.ne.s32.totalorder %s62, %s76
    %p78 = scmp.eq.s32.totalorder %s17, 0
    %p79 = por %p77, %p78
    %s81 = sadd.s32 %s80, 1
    %p84 = scmp.eq.s32.totalorder %s11, 1
    %p85 = scmp.ne.s32.totalorder %s80, %s82
    %p86 = scmp.eq.s32.totalorder %s11, 0
    %p87 = por %p85, %p86
    %p88 = scmp.ne.s32.totalorder %s80, %s82
    %p89 = scmp.eq.s32.totalorder %s16, 1
    %p90 = por %p88, %p89
    %p91 = scmp.ne.s32.totalorder %s82, %s83
    %p92 = scmp.eq.s32.totalorder %s16, 0
    %p93 = por %p91, %p92
    %p94 = scmp.ne.s32.totalorder %s82, %s83
    %p95 = scmp.eq.s32.totalorder %s17, 1
    %p96 = por %p94, %p95
    %p98 = scmp.ne.s32.totalorder %s83, %s97
    %p99 = scmp.eq.s32.totalorder %s17, 0
    %p100 = por %p98, %p99
    %s102 = sadd.s32 %s101, 1
    %p105 = scmp.eq.s32.totalorder %s11, 1
    %p106 = scmp.ne.s32.totalorder %s101, %s103
    %p107 = scmp.eq.s32.totalorder %s11, 0
    %p108 = por %p106, %p107
    %p109 = scmp.ne.s32.totalorder %s101, %s103
    %p110 = scmp.eq.s32.totalorder %s16, 1
    %p111 = por %p109, %p110
    %p112 = scmp.ne.s32.totalorder %s103, %s104
    %p113 = scmp.eq.s32.totalorder %s16, 0
    %p114 = por %p112, %p113
    %p115 = scmp.ne.s32.totalorder %s103, %s104
    %p116 = scmp.eq.s32.totalorder %s17, 1
    %p117 = por %p115, %p116
    %p119 = scmp.ne.s32.totalorder %s104, %s118
    %p120 = scmp.eq.s32.totalorder %s17, 0
    %p121 = por %p119, %p120
    %s123 = sadd.s32 %s122, 1
    %p126 = scmp.eq.s32.totalorder %s11, 1
    %p127 = scmp.ne.s32.totalorder %s122, %s124
    %p128 = scmp.eq.s32.totalorder %s11, 0
    %p129 = por %p127, %p128
    %p130 = scmp.ne.s32.totalorder %s122, %s124
    %p131 = scmp.eq.s32.totalorder %s16, 1
    %p132 = por %p130, %p131
    %p133 = scmp.ne.s32.totalorder %s124, %s125
    %p134 = scmp.eq.s32.totalorder %s16, 0
    %p135 = por %p133, %p134
    %p136 = scmp.ne.s32.totalorder %s124, %s125
    %p137 = scmp.eq.s32.totalorder %s17, 1
    %p138 = por %p136, %p137
    %p140 = scmp.ne.s32.totalorder %s125, %s139
    %p141 = scmp.eq.s32.totalorder %s17, 0
    %p142 = por %p140, %p141
    %s143 = ssub.s32 %s18, %s30
    %s144 = ssub.s32 %s19, %s26
    %s145 = sor.u32 %s143, %s144
    %p146 = scmp.eq.s32.totalorder %s145, 0
    %s148 = sadd.s32 %s147, 1
    %s149 = scalar_select %p146, %s147, %s148
    %p152 = pneg %p146
    %p153 = scmp.eq.s32.totalorder %s11, 1
    %p154 = por %p152, %p153
    %p155 = scmp.ne.s32.totalorder %s147, %s150
    %p156 = scmp.eq.s32.totalorder %s11, 0
    %p157 = por %p155, %p156
    %p158 = scmp.ne.s32.totalorder %s147, %s150
    %p159 = scmp.eq.s32.totalorder %s16, 1
    %p160 = por %p158, %p159
    %p161 = scmp.ne.s32.totalorder %s150, %s151
    %p162 = scmp.eq.s32.totalorder %s16, 0
    %p163 = por %p161, %p162
    %p164 = scmp.ne.s32.totalorder %s150, %s151
    %p165 = scmp.eq.s32.totalorder %s17, 1
    %p166 = por %p164, %p165
    %p168 = scmp.ne.s32.totalorder %s151, %s167
    %p169 = scmp.eq.s32.totalorder %s17, 0
    %p170 = por %p168, %p169
    %p171 = scmp.le.s32.totalorder 1, %s11
    %p172 = scmp.lt.s32.totalorder %s11, 3
    %p173 = pnand %p171, %p172
    %p174 = pneg %p173
    // Predicated region
    $region9: #{mfim_forward.1} parent=5 // pred_check
      _
    $region10: #{mfim_forward.1} parent=5 // pred_check_branch
      %176 = sbr.rel (%p173) target = $region12
    $region11: #{mfim_forward.1} parent=5 // pred_region
      %s177 = ssub.s32 %s11, 1
      // Predicated region
      $region13: #{mfim_forward.1} parent=11 // pred_check
        %p178 = pneg %p72
      $region14: #{mfim_forward.1} parent=11 // pred_check_branch
        %180 = sbr.rel (%p178) target = $region16
      $region15: #{mfim_forward.1} parent=11 // pred_region
        _
      $region16: #{mfim_forward.1} parent=11 // pred_fallthru
        _
      // Predicated region
      $region17: #{mfim_forward.1} parent=11 // pred_check
        %p181 = pneg %p93
      $region18: #{mfim_forward.1} parent=11 // pred_check_branch
        %183 = sbr.rel (%p181) target = $region20
      $region19: #{mfim_forward.1} parent=11 // pred_region
        _
      $region20: #{mfim_forward.1} parent=11 // pred_fallthru
        _
      // Predicated region
      $region21: #{mfim_forward.1} parent=11 // pred_check
        %p184 = pneg %p114
      $region22: #{mfim_forward.1} parent=11 // pred_check_branch
        %186 = sbr.rel (%p184) target = $region24
      $region23: #{mfim_forward.1} parent=11 // pred_region
        _
      $region24: #{mfim_forward.1} parent=11 // pred_fallthru
        _
      // Predicated region
      $region25: #{mfim_forward.1} parent=11 // pred_check
        %p187 = pneg %p135
      $region26: #{mfim_forward.1} parent=11 // pred_check_branch
        %189 = sbr.rel (%p187) target = $region28
      $region27: #{mfim_forward.1} parent=11 // pred_region
        _
      $region28: #{mfim_forward.1} parent=11 // pred_fallthru
        _
    $region12: #{mfim_forward.1} parent=5 // pred_fallthru
      _
    %p190 = scmp.lt.s32.totalorder %s11, 2
    // Predicated region
    $region29: #{mfim_forward.1} parent=5 // pred_check
      %p191 = pneg %p190
    $region30: #{mfim_forward.1} parent=5 // pred_check_branch
      %193 = sbr.rel (%p191) target = $region32
    $region31: #{mfim_forward.1} parent=5 // pred_region
      // Predicated region
      $region33: #{mfim_forward.1} parent=31 // pred_check
        %p194 = pneg %p45
      $region34: #{mfim_forward.1} parent=31 // pred_check_branch
        %196 = sbr.rel (%p194) target = $region36
      $region35: #{mfim_forward.1} parent=31 // pred_region
        %s197 = smul.u32 2, %s19
        %p198 = scmp.lt.s32.totalorder %s18, 1
        %s199 = scalar_select %p198, %s18, 1
        %p200 = scmp.lt.s32.totalorder %s197, 1
        %s201 = scalar_select %p200, %s197, 1
        %s202 = smul.addr %s199, 2
        %s203 = sadd.s32 %s201, %s202
        %s204 = smul.addr %s203, 4
        %s205 = scalar_lea.vmem %s0, %s204
        %s206 = smul.u32 2, %s19
      $region36: #{mfim_forward.1} parent=31 // pred_fallthru
        _
    $region32: #{mfim_forward.1} parent=5 // pred_fallthru
      _
    %p207 = scmp.le.s32.totalorder 1, %s11
    %p208 = scmp.lt.s32.totalorder %s11, 3
    %p209 = pnand %p207, %p208
    %p210 = pneg %p209
    // Predicated region
    $region37: #{mfim_forward.1} parent=5 // pred_check
      _
    $region38: #{mfim_forward.1} parent=5 // pred_check_branch
      %212 = sbr.rel (%p209) target = $region40
    $region39: #{mfim_forward.1} parent=5 // pred_region
      %s213 = ssub.s32 %s11, 1
      %s214 = smul.u32 2, %s21
      %p215 = scmp.lt.s32.totalorder %s20, 1
      %s216 = scalar_select %p215, %s20, 1
      %p217 = scmp.lt.s32.totalorder %s214, 1
      %s218 = scalar_select %p217, %s214, 1
      %s219 = smul.addr %s216, 2
      %s220 = sadd.s32 %s218, %s219
      %s221 = smul.addr %s220, 4
      %s222 = scalar_lea.vmem %s0, %s221
      %p223 = pneg %p51
      %p224 = pneg %p48
      %p225 = pneg %p72
      %p226 = pneg %p69
      %p227 = pneg %p93
      %p228 = pneg %p90
      %p229 = pneg %p114
      %p230 = pneg %p111
      %p231 = pneg %p135
      %p232 = pneg %p132
      %p233 = pneg %p163
      %p234 = pneg %p160
      %s235 = smul.u32 2, %s21
      %p236 = scmp.lt.s32.totalorder %s20, 1
      %s237 = scalar_select %p236, %s20, 1
      %p238 = scmp.lt.s32.totalorder %s235, 1
      %s239 = scalar_select %p238, %s235, 1
      %s240 = smul.addr %s237, 2
      %s241 = sadd.s32 %s239, %s240
      %s242 = smul.addr %s241, 8
      %s243 = scalar_lea.vmem %s5, %s242
      %s244 = smul.u32 2, %s21
      %p245 = scmp.lt.s32.totalorder %s20, 1
      %s246 = scalar_select %p245, %s20, 1
      %p247 = scmp.lt.s32.totalorder %s244, 1
      %s248 = scalar_select %p247, %s244, 1
      %s249 = smul.addr %s246, 2
      %s250 = sadd.s32 %s248, %s249
      %s251 = smul.addr %s250, 4
      %s252 = scalar_lea.vmem %s0, %s251
      %s253 = smul.u32 2, %s21
      %s254 = smul.u32 2, %s21
      %p255 = scmp.lt.s32.totalorder %s20, 1
      %s256 = scalar_select %p255, %s20, 1
      %p257 = scmp.lt.s32.totalorder %s254, 1
      %s258 = scalar_select %p257, %s254, 1
      %s259 = smul.addr %s256, 2
      %s260 = sadd.s32 %s258, %s259
      %s261 = smul.addr %s260, 8
      %s262 = scalar_lea.vmem %s5, %s261
      %s263 = smul.u32 2, %s21
      %v264 = vld [vmem:[%s252] sm:$0xff]
      %v265 = vld [vmem:[%s1] sm:$0xff]
      %v266 = vld [vmem:[%s1 + $0x8] sm:$0xff]
      %v267 = vld [vmem:[%s2] sm:$0xff]
      %v268 = vld [vmem:[%s2 + $0x8] sm:$0xff]
      %270 = vset.pattern.permute.xlu0 0
      %271 = vperm.xlu0 %270, %v267
      %v272 = vpop.permute.xlu0 %271
      %275 = vset.pattern.permute.xlu0 0
      %276 = vperm.xlu0 %275, %v268
      %v277 = vpop.permute.xlu0 %276
      %280 = vst [vmem:[#allocation1] ss:$2 sm:$0xff] %v264
      %v281 = vld.sshfl [vmem:[#allocation1] sm:$0xff pattern:$0x75316420]
      %v282 = vld.sshfl [vmem:[#allocation1 + $0x8] sm:$0xff pattern:$0x75316420]
      %vm283 = vcmask 31744
      %v285 = vsel %vm283, %v265, 0
      %v288 = vsel %vm283, %v266, 0
      %vm290 = vcmask 1043456
      %v291 = vsel %vm290, %v281, 0
      %v293 = vsel %vm290, %v282, 0
      %295 = vmatpush.msra.mxu0 0.0
      %296 = vmatpush.msra.mxu0 0.0
      %297 = vmatpush.msra.mxu0 0.0
      %298 = vmatpush.msra.mxu0 0.0
      %299 = vmatpush.msra.mxu0 0.0
      %300 = vmatpush.msra.mxu0 0.0
      %301 = vmatpush.msra.mxu0 0.0
      %302 = vmatpush.msra.mxu0 0.0
      %303 = vmatpush.msra.mxu0 0.0
      %304 = vmatpush.msra.mxu0 0.0
      %305 = vmatpush.msra.mxu0 0.0
      %306 = vmatpush.msra.mxu0 0.0
      %307 = vmatpush.msra.mxu0 0.0
      %308 = vmatpush.msra.mxu0 0.0
      %309 = vmatpush.msra.mxu0 0.0
      %310 = vmatpush.msra.mxu0 %v291
      %311 = vmatmul.f32.gmra.mxu0 %v285
      %v312 = vpop.f32.mrf.mxu0
      %v313 = vadd.f32 %v272, %v312
      %314 = vmatmul.f32.gmra.mxu0 %v288
      %v315 = vpop.f32.mrf.mxu0
      %v316 = vadd.f32 %v277, %v315
      %317 = vdwg.mxu0
      %318 = vmatpush.msra.mxu0 0.0
      %319 = vmatpush.msra.mxu0 0.0
      %320 = vmatpush.msra.mxu0 0.0
      %321 = vmatpush.msra.mxu0 0.0
      %322 = vmatpush.msra.mxu0 0.0
      %323 = vmatpush.msra.mxu0 0.0
      %324 = vmatpush.msra.mxu0 0.0
      %325 = vmatpush.msra.mxu0 0.0
      %326 = vmatpush.msra.mxu0 0.0
      %327 = vmatpush.msra.mxu0 0.0
      %328 = vmatpush.msra.mxu0 0.0
      %329 = vmatpush.msra.mxu0 0.0
      %330 = vmatpush.msra.mxu0 0.0
      %331 = vmatpush.msra.mxu0 0.0
      %332 = vmatpush.msra.mxu0 0.0
      %333 = vmatpush.msra.mxu0 %v293
      %334 = vmatmul.f32.gmra.mxu0 %v285
      %v335 = vpop.f32.mrf.mxu0
      %v336 = vadd.f32 %v272, %v335
      %337 = vmatmul.f32.gmra.mxu0 %v288
      %v338 = vpop.f32.mrf.mxu0
      %v339 = vadd.f32 %v277, %v338
      %340 = vdwg.mxu0
      %v343 = vrot.slane %v313, 4
      %v344 = vrot.slane %v336, 4
      %v347 = vmul.f32 %v313, %v343
      %v348 = vmul.f32 %v336, %v344
      %v349 = vld [vmem:[%s3] sm:$0xff]
      %v351 = vsel %vm283, %v349, 0
      %v354 = vsel %vm290, %v347, 0
      %v357 = vsel %vm290, %v348, 0
      %359 = vmatpush.msra.mxu0 0.0
      %360 = vmatpush.msra.mxu0 0.0
      %361 = vmatpush.msra.mxu0 0.0
      %362 = vmatpush.msra.mxu0 0.0
      %363 = vmatpush.msra.mxu0 0.0
      %364 = vmatpush.msra.mxu0 0.0
      %365 = vmatpush.msra.mxu0 0.0
      %366 = vmatpush.msra.mxu0 0.0
      %367 = vmatpush.msra.mxu0 0.0
      %368 = vmatpush.msra.mxu0 0.0
      %369 = vmatpush.msra.mxu0 0.0
      %370 = vmatpush.msra.mxu0 0.0
      %371 = vmatpush.msra.mxu0 0.0
      %372 = vmatpush.msra.mxu0 0.0
      %373 = vmatpush.msra.mxu0 0.0
      %374 = vmatpush.msra.mxu0 %v354
      %375 = vmatmul.f32.gmra.mxu0 %v351
      %v376 = vpop.f32.mrf.mxu0
      %v377 = vadd.f32 %v316, %v376
      %378 = vdwg.mxu0
      %379 = vmatpush.msra.mxu0 0.0
      %380 = vmatpush.msra.mxu0 0.0
      %381 = vmatpush.msra.mxu0 0.0
      %382 = vmatpush.msra.mxu0 0.0
      %383 = vmatpush.msra.mxu0 0.0
      %384 = vmatpush.msra.mxu0 0.0
      %385 = vmatpush.msra.mxu0 0.0
      %386 = vmatpush.msra.mxu0 0.0
      %387 = vmatpush.msra.mxu0 0.0
      %388 = vmatpush.msra.mxu0 0.0
      %389 = vmatpush.msra.mxu0 0.0
      %390 = vmatpush.msra.mxu0 0.0
      %391 = vmatpush.msra.mxu0 0.0
      %392 = vmatpush.msra.mxu0 0.0
      %393 = vmatpush.msra.mxu0 0.0
      %394 = vmatpush.msra.mxu0 %v357
      %395 = vmatmul.f32.gmra.mxu0 %v351
      %v396 = vpop.f32.mrf.mxu0
      %v397 = vadd.f32 %v339, %v396
      %398 = vdwg.mxu0
      %v399 = vld [vmem:[%s4] sm:$0xff]
      %401 = vset.pattern.permute.xlu0 0
      %402 = vperm.xlu0 %401, %v399
      %v403 = vpop.permute.xlu0 %402
      %v405 = vadd.f32 %v377, %v403
      %v406 = vadd.f32 %v397, %v403
      %407 = vst [vmem:[%s262] sm:$0xff] %v405
      %408 = vst [vmem:[%s262 + $0x8] sm:$0xff] %v406
      %s409 = smul.u32 2, %s21
      %p410 = scmp.lt.s32.totalorder %s20, 1
      %s411 = scalar_select %p410, %s20, 1
      %p412 = scmp.lt.s32.totalorder %s409, 1
      %s413 = scalar_select %p412, %s409, 1
      %s414 = smul.addr %s411, 2
      %s415 = sadd.s32 %s413, %s414
      %s416 = smul.addr %s415, 8
      %s417 = scalar_lea.vmem %s5, %s416
      // Predicated region
      $region41: #{mfim_forward.1} parent=39 // pred_check
        %p418 = pneg %p160
      $region42: #{mfim_forward.1} parent=39 // pred_check_branch
        %420 = sbr.rel (%p418) target = $region44
      $region43: #{mfim_forward.1} parent=39 // pred_region
        %s421 = smul.u32 2, %s21
      $region44: #{mfim_forward.1} parent=39 // pred_fallthru
        _
    $region40: #{mfim_forward.1} parent=5 // pred_fallthru
      _
    %p422 = scmp.le.s32.totalorder 2, %s11
    // Predicated region
    $region45: #{mfim_forward.1} parent=5 // pred_check
      %p423 = pneg %p422
    $region46: #{mfim_forward.1} parent=5 // pred_check_branch
      %425 = sbr.rel (%p423) target = $region48
    $region47: #{mfim_forward.1} parent=5 // pred_region
      %s426 = ssub.s32 %s11, 2
      // Predicated region
      $region49: #{mfim_forward.1} parent=47 // pred_check
        %p427 = pneg %p166
      $region50: #{mfim_forward.1} parent=47 // pred_check_branch
        %429 = sbr.rel (%p427) target = $region52
      $region51: #{mfim_forward.1} parent=47 // pred_region
        %s430 = smul.u32 2, %s23
        %p431 = scmp.lt.s32.totalorder %s22, 1
        %s432 = scalar_select %p431, %s22, 1
        %p433 = scmp.lt.s32.totalorder %s430, 1
        %s434 = scalar_select %p433, %s430, 1
        %s435 = smul.addr %s432, 2
        %s436 = sadd.s32 %s434, %s435
        %s437 = smul.addr %s436, 8
        %s438 = scalar_lea.vmem %s5, %s437
      $region52: #{mfim_forward.1} parent=47 // pred_fallthru
        _
    $region48: #{mfim_forward.1} parent=5 // pred_fallthru
      _
  $region6: #{mfim_forward.1} parent=0 // loop_footer
    %s15 = sadd.s32 1, %s11
  $region7: #{mfim_forward.1} parent=0 // loop_footer_branch
    %10 = sbr.rel target = $region3
  $region8: #{mfim_forward.1} parent=0 // loop_exit
    _

</llo_original>
